<compile_context>
chip_gen: v7x
topology: tpu7x:2x2x1
jax: 0.10.0
libtpu: 0.0.40
codegen_flags: <defaults>
</compile_context>

<pallas_src>
import functools

import jax
import jax.numpy as jnp
from jax.experimental import pallas as pl
from jax.experimental.pallas import tpu as pltpu


# ----------------------------- fused Pallas kernel -----------------------------

def _generator_fused_kernel(x_ref, g_ref,
                            aexp_ref, ccat_ref,
                            w2_ref, b2_ref,
                            lw_ref, lb_ref,
                            o_ref, *, H, W, Ch):
    N = H * W
    xr = x_ref[0]            # (Cin*H, W)  raw source pixels, row index = c*H + h
    g = g_ref[0]             # (2, N)      row 0 = x-coord, row 1 = y-coord
    Cin = xr.shape[0] // H

    # ---- grid_sample coordinate math: bilinear, padding_mode='reflection',
    #      align_corners=False — done on (1, N) pixels-in-lanes rows.
    def unnorm_reflect_clip(coord, size):
        c = ((coord + 1.0) * size - 1.0) * 0.5      # unnormalize (align_corners=False)
        span = jnp.float32(size)                    # reflect about [-0.5, size-0.5]
        lo = jnp.float32(-0.5)
        a = jnp.abs(c - lo)
        extra = jnp.mod(a, span)
        flips = jnp.floor(a / span)
        c = jnp.where(jnp.mod(flips, 2.0) == 0.0, extra + lo, span - extra + lo)
        return jnp.clip(c, 0.0, jnp.float32(size - 1))   # matches PyTorch clip

    ix = unnorm_reflect_clip(g[0:1, :], W)          # (1, N)
    iy = unnorm_reflect_clip(g[1:2, :], H)          # (1, N)

    ix0 = jnp.floor(ix)
    iy0 = jnp.floor(iy)
    tx = ix - ix0
    ty = iy - iy0
    ix0i = ix0.astype(jnp.int32)
    iy0i = iy0.astype(jnp.int32)
    ix1i = jnp.minimum(ix0i + 1, W - 1)             # clamped; weight is 0 at the edge
    iy1i = jnp.minimum(iy0i + 1, H - 1)

    # ---- separable gather matrices: (W,N) and (H,N) instead of a dense (N,N) G.
    # Each column sums to exactly 1 (required for the host-side pre_decoder fold).
    w_iota = jax.lax.broadcasted_iota(jnp.int32, (W, N), 0)
    h_iota = jax.lax.broadcasted_iota(jnp.int32, (H, N), 0)
    Rx = (jnp.where(w_iota == ix0i, 1.0 - tx, 0.0)
          + jnp.where(w_iota == ix1i, tx, 0.0))     # (W, N)
    Ry = (jnp.where(h_iota == iy0i, 1.0 - ty, 0.0)
          + jnp.where(h_iota == iy1i, ty, 0.0))     # (H, N)

    # ---- bilinear gather of the RAW input along the W axis on the MXU:
    #      tmp[(c,h), n] = sum_w x[c,h,w] * Rx[w, n]
    tmp = jnp.dot(xr, Rx, preferred_element_type=jnp.float32)          # (Cin*H, N)
    masked = tmp * jnp.tile(Ry, (Cin, 1))                              # (Cin*H, N)

    # ---- folded refinement entry.  aexp = repeat([w1@pre_w ; ws@pre_w], H, axis=1),
    # so aexp @ masked contracts the H axis of the separable gather AND applies the
    # fused [w1; ws] @ pre_decoder in a single MXU pass.  Biases folded into ccat.
    hs = jnp.dot(aexp_ref[...], masked,
                 preferred_element_type=jnp.float32) + ccat_ref[...]   # (2Ch, N)
    h = jnp.maximum(hs[:Ch, :], 0.0)
    s = hs[Ch:, :]
    h = jnp.dot(w2_ref[...], h, preferred_element_type=jnp.float32) + b2_ref[...]
    r = jnp.maximum(h + s, 0.0)                                        # (Ch, N)

    out = jnp.dot(lw_ref[...], r, preferred_element_type=jnp.float32) + lb_ref[...]
    o_ref[0] = out.astype(o_ref.dtype)                                 # (Cin, N) lane-dense


def generator_fused(x_bchw, grid_b2n, folded, H, W):
    """x: (B, Cin*H, W) raw pixels (rows = (c,h)); grid: (B, 2, N) normalized (x;y)."""
    B, CH, _ = x_bchw.shape
    N = H * W
    Cin = CH // H
    Ch = folded["w2"].shape[0]
    twoCh = folded["aexp"].shape[0]

    def const(shape):
        return pl.BlockSpec(shape, lambda b: (0,) * len(shape))

    return pl.pallas_call(
        functools.partial(_generator_fused_kernel, H=H, W=W, Ch=Ch),
        out_shape=jax.ShapeDtypeStruct((B, Cin, N), x_bchw.dtype),
        grid_spec=pltpu.PrefetchScalarGridSpec(
            num_scalar_prefetch=0,
            grid=(B,),
            in_specs=[
                pl.BlockSpec((1, CH, W), lambda b: (b, 0, 0)),
                pl.BlockSpec((1, 2, N), lambda b: (b, 0, 0)),
                const((twoCh, CH)), const((twoCh, 1)),
                const((Ch, Ch)), const((Ch, 1)),
                const((Cin, Ch)), const((Cin, 1)),
            ],
            out_specs=pl.BlockSpec((1, Cin, N), lambda b: (b, 0, 0)),
        ),
        compiler_params=pltpu.CompilerParams(dimension_semantics=("parallel",)),
    )(x_bchw, grid_b2n,
      folded["aexp"], folded["ccat"],
      folded["w2"], folded["b2"],
      folded["lw"], folded["lb"])


# ----------------------------- glue / params -----------------------------

def dense_motion_placeholder(source_image, kp_driving, kp_source):
    # TODO(synk): DenseMotionEstimator is not defined in the reference source;
    # emit a deterministic (B, H, W, 2) sampling grid (identity + kp shift).
    B, _, H, W = source_image.shape
    xs = (jnp.arange(W, dtype=jnp.float32) + 0.5) / W * 2.0 - 1.0
    ys = (jnp.arange(H, dtype=jnp.float32) + 0.5) / H * 2.0 - 1.0
    gx, gy = jnp.meshgrid(xs, ys, indexing="xy")             # (H, W)
    grid = jnp.stack([gx, gy], axis=-1)[None]                # (1, H, W, 2)
    shift = jnp.mean(kp_driving - kp_source, axis=1)         # (B, 2)
    return (grid + 0.05 * shift[:, None, None, :]).astype(jnp.float32)


def init_params(key, input_dim, inter_channels):
    # TODO(synk): SConv2d / ResidualModule bodies are not provided; SConv2d is
    # treated as a plain 1x1 Conv2d and ResidualModule as a 1x1-conv residual
    # block with a projection shortcut.  Weights stored channels-major (Cout, Cin).
    C0 = inter_channels // 2
    Ch = inter_channels // 4
    ks = jax.random.split(key, 10)

    def w(k, cout, cin):
        return jax.random.normal(k, (cout, cin), jnp.float32) / jnp.sqrt(jnp.float32(cin))

    def b(k, cout):
        return 0.01 * jax.random.normal(k, (cout, 1), jnp.float32)

    return {
        "pre_w": w(ks[0], C0, input_dim), "pre_b": b(ks[1], C0),
        "res_w1": w(ks[2], Ch, C0), "res_b1": b(ks[3], Ch),
        "res_w2": w(ks[4], Ch, Ch), "res_b2": b(ks[5], Ch),
        "res_ws": w(ks[6], Ch, C0), "res_bs": b(ks[7], Ch),
        "lin_w": w(ks[8], input_dim, Ch), "lin_b": b(ks[9], input_dim),
    }


def fold_params(params, H):
    """Host-side algebraic folding.

    1) Commute the 1x1 pre_decoder through the (affine-preserving) grid_sample:
         A1 = w1 @ pre_w,  c1 = w1 @ pre_b + b1   (same for the shortcut ws/bs).
    2) Fuse the sibling convs [A1; As] / [c1; cs] into one matmul / one bias add.
    3) Expand the fused weight over the H axis (repeat columns H times) so the
       separable-gather H reduction is absorbed into the same MXU pass.
    Exact up to f32 rounding (gather columns sum to 1; clamped corners weight 0).
    """
    a1 = params["res_w1"] @ params["pre_w"]                       # (Ch, Cin)
    a_s = params["res_ws"] @ params["pre_w"]                      # (Ch, Cin)
    c1 = params["res_w1"] @ params["pre_b"] + params["res_b1"]    # (Ch, 1)
    c_s = params["res_ws"] @ params["pre_b"] + params["res_bs"]   # (Ch, 1)
    acat = jnp.concatenate([a1, a_s], axis=0)                     # (2Ch, Cin)
    aexp = jnp.repeat(acat, H, axis=1)                            # (2Ch, Cin*H)
    ccat = jnp.concatenate([c1, c_s], axis=0)                     # (2Ch, 1)
    return {"aexp": aexp, "ccat": ccat,
            "w2": params["res_w2"], "b2": params["res_b2"],
            "lw": params["lin_w"], "lb": params["lin_b"]}


def generator_forward(params, source_image, kp_driving, kp_source):
    """source_image: NCHW (B, Cin, H, W).  Returns (result NCHW, dense_flow BHW2)."""
    B, Cin, H, W = source_image.shape
    N = H * W

    dense_flow = dense_motion_placeholder(source_image, kp_driving, kp_source)  # (B,H,W,2)

    folded = fold_params(params, H)

    # Flattened NCHW views — no transposes needed.
    x = source_image.reshape(B, Cin * H, W)                     # rows = (c, h), lanes = w
    g = jnp.transpose(dense_flow.reshape(B, N, 2), (0, 2, 1))   # (B, 2, N)

    out = generator_fused(x, g, folded, H, W)                   # (B, Cin, N)
    result = out.reshape(B, Cin, H, W)                          # NCHW
    return result, dense_flow


# --------------------------------- main ---------------------------------

if __name__ == "__main__":
    key = jax.random.PRNGKey(0)
    input_dim = 3
    inter_channels = 16
    B, H, W = 2, 16, 16
    num_kp = 5

    k_img, k_kd, k_ks, k_par = jax.random.split(key, 4)
    source_image = jax.random.normal(k_img, (B, input_dim, H, W), jnp.float32)
    kp_driving = jax.random.uniform(k_kd, (B, num_kp, 2), jnp.float32, -1.0, 1.0)
    kp_source = jax.random.uniform(k_ks, (B, num_kp, 2), jnp.float32, -1.0, 1.0)
    params = init_params(k_par, input_dim, inter_channels)

    fwd = jax.jit(generator_forward)
    result, dense_flow = fwd(params, source_image, kp_driving, kp_source)
    jax.block_until_ready((result, dense_flow))

    assert result.shape == (B, input_dim, H, W), result.shape
    assert dense_flow.shape == (B, H, W, 2), dense_flow.shape
    assert result.dtype == jnp.float32 and dense_flow.dtype == jnp.float32
    print("KERNEL_OK")
</pallas_src>

<mosaic_0001>
module attributes {stable_mosaic.version = 11 : i64} {
  func.func @_generator_fused_kernel(%arg0: i32, %arg1: memref<1x48x16xf32, #tpu.memory_space<vmem>>, %arg2: memref<1x2x256xf32, #tpu.memory_space<vmem>>, %arg3: memref<8x48xf32, #tpu.memory_space<vmem>>, %arg4: memref<8x1xf32, #tpu.memory_space<vmem>>, %arg5: memref<4x4xf32, #tpu.memory_space<vmem>>, %arg6: memref<4x1xf32, #tpu.memory_space<vmem>>, %arg7: memref<3x4xf32, #tpu.memory_space<vmem>>, %arg8: memref<3x1xf32, #tpu.memory_space<vmem>>, %arg9: memref<1x3x256xf32, #tpu.memory_space<vmem>>) attributes {dimension_semantics = [#tpu.dimension_semantics<parallel>], iteration_bounds = array<i64: 2>, scalar_prefetch = 0 : i64, scratch_operands = 0 : i64, tpu.core_type = #tpu.core_type<tc>, window_params = [{transform_indices = @transform_0, window_bounds = array<i64: 1, 48, 16>}, {transform_indices = @transform_1, window_bounds = array<i64: 1, 2, 256>}, {pipeline_mode = #tpu.pipeline_mode<synchronous>, transform_indices = @transform_2, window_bounds = array<i64: 8, 48>}, {pipeline_mode = #tpu.pipeline_mode<synchronous>, transform_indices = @transform_3, window_bounds = array<i64: 8, 1>}, {pipeline_mode = #tpu.pipeline_mode<synchronous>, transform_indices = @transform_4, window_bounds = array<i64: 4, 4>}, {pipeline_mode = #tpu.pipeline_mode<synchronous>, transform_indices = @transform_5, window_bounds = array<i64: 4, 1>}, {pipeline_mode = #tpu.pipeline_mode<synchronous>, transform_indices = @transform_6, window_bounds = array<i64: 3, 4>}, {pipeline_mode = #tpu.pipeline_mode<synchronous>, transform_indices = @transform_7, window_bounds = array<i64: 3, 1>}, {transform_indices = @transform_8, window_bounds = array<i64: 1, 3, 256>}]} {
    %c0 = arith.constant 0 : index
    %c0_0 = arith.constant 0 : index
    %c0_1 = arith.constant 0 : index
    %0 = vector.load %arg1[%c0, %c0_0, %c0_1] : memref<1x48x16xf32, #tpu.memory_space<vmem>>, vector<1x48x16xf32>
    %1 = vector.shape_cast %0 : vector<1x48x16xf32> to vector<48x16xf32>
    %c0_2 = arith.constant 0 : index
    %c0_3 = arith.constant 0 : index
    %c0_4 = arith.constant 0 : index
    %2 = vector.load %arg2[%c0_2, %c0_3, %c0_4] : memref<1x2x256xf32, #tpu.memory_space<vmem>>, vector<1x2x256xf32>
    %3 = vector.shape_cast %2 : vector<1x2x256xf32> to vector<2x256xf32>
    %4 = vector.extract_strided_slice %3 {offsets = [0, 0], sizes = [1, 256], strides = [1, 1]} : vector<2x256xf32> to vector<1x256xf32>
    %cst = arith.constant 1.000000e+00 : f32
    %5 = vector.broadcast %cst : f32 to vector<1x256xf32>
    %6 = arith.addf %4, %5 : vector<1x256xf32>
    %cst_5 = arith.constant 1.600000e+01 : f32
    %7 = vector.broadcast %cst_5 : f32 to vector<1x256xf32>
    %8 = arith.mulf %6, %7 : vector<1x256xf32>
    %cst_6 = arith.constant 1.000000e+00 : f32
    %9 = vector.broadcast %cst_6 : f32 to vector<1x256xf32>
    %10 = arith.subf %8, %9 : vector<1x256xf32>
    %cst_7 = arith.constant 5.000000e-01 : f32
    %11 = vector.broadcast %cst_7 : f32 to vector<1x256xf32>
    %12 = arith.mulf %10, %11 : vector<1x256xf32>
    %cst_8 = arith.constant -5.000000e-01 : f32
    %13 = vector.broadcast %cst_8 : f32 to vector<1x256xf32>
    %14 = arith.subf %12, %13 : vector<1x256xf32>
    %15 = math.absf %14 : vector<1x256xf32>
    %cst_9 = arith.constant 1.600000e+01 : f32
    %16 = vector.broadcast %cst_9 : f32 to vector<1x256xf32>
    %17 = arith.remf %15, %16 : vector<1x256xf32>
    %cst_10 = arith.constant 0.000000e+00 : f32
    %18 = vector.broadcast %cst_10 : f32 to vector<1x256xf32>
    %19 = arith.cmpf one, %17, %18 : vector<1x256xf32>
    %cst_11 = arith.constant 0.000000e+00 : f32
    %20 = vector.broadcast %cst_11 : f32 to vector<1x256xf32>
    %21 = arith.cmpf olt, %17, %20 : vector<1x256xf32>
    %cst_12 = arith.constant 0.000000e+00 : f32
    %22 = arith.cmpf olt, %cst_9, %cst_12 : f32
    %23 = vector.broadcast %22 : i1 to vector<1x256xi1>
    %24 = vector.broadcast %23 : vector<1x256xi1> to vector<1x256xi1>
    %25 = arith.xori %21, %24 : vector<1x256xi1>
    %26 = arith.andi %25, %19 : vector<1x256xi1>
    %27 = vector.broadcast %cst_9 : f32 to vector<1x256xf32>
    %28 = arith.addf %17, %27 : vector<1x256xf32>
    %29 = arith.select %26, %28, %17 : vector<1x256xi1>, vector<1x256xf32>
    %cst_13 = arith.constant 1.600000e+01 : f32
    %30 = vector.broadcast %cst_13 : f32 to vector<1x256xf32>
    %31 = arith.divf %15, %30 : vector<1x256xf32>
    %32 = math.floor %31 : vector<1x256xf32>
    %cst_14 = arith.constant 2.000000e+00 : f32
    %33 = vector.broadcast %cst_14 : f32 to vector<1x256xf32>
    %34 = arith.remf %32, %33 : vector<1x256xf32>
    %cst_15 = arith.constant 0.000000e+00 : f32
    %35 = vector.broadcast %cst_15 : f32 to vector<1x256xf32>
    %36 = arith.cmpf one, %34, %35 : vector<1x256xf32>
    %cst_16 = arith.constant 0.000000e+00 : f32
    %37 = vector.broadcast %cst_16 : f32 to vector<1x256xf32>
    %38 = arith.cmpf olt, %34, %37 : vector<1x256xf32>
    %cst_17 = arith.constant 0.000000e+00 : f32
    %39 = arith.cmpf olt, %cst_14, %cst_17 : f32
    %40 = vector.broadcast %39 : i1 to vector<1x256xi1>
    %41 = vector.broadcast %40 : vector<1x256xi1> to vector<1x256xi1>
    %42 = arith.xori %38, %41 : vector<1x256xi1>
    %43 = arith.andi %42, %36 : vector<1x256xi1>
    %44 = vector.broadcast %cst_14 : f32 to vector<1x256xf32>
    %45 = arith.addf %34, %44 : vector<1x256xf32>
    %46 = arith.select %43, %45, %34 : vector<1x256xi1>, vector<1x256xf32>
    %cst_18 = arith.constant 0.000000e+00 : f32
    %47 = vector.broadcast %cst_18 : f32 to vector<1x256xf32>
    %48 = arith.cmpf oeq, %46, %47 : vector<1x256xf32>
    %cst_19 = arith.constant -5.000000e-01 : f32
    %49 = vector.broadcast %cst_19 : f32 to vector<1x256xf32>
    %50 = arith.addf %29, %49 : vector<1x256xf32>
    %cst_20 = arith.constant 1.600000e+01 : f32
    %51 = vector.broadcast %cst_20 : f32 to vector<1x256xf32>
    %52 = arith.subf %51, %29 : vector<1x256xf32>
    %cst_21 = arith.constant -5.000000e-01 : f32
    %53 = vector.broadcast %cst_21 : f32 to vector<1x256xf32>
    %54 = arith.addf %52, %53 : vector<1x256xf32>
    %55 = arith.select %48, %50, %54 : vector<1x256xi1>, vector<1x256xf32>
    %cst_22 = arith.constant 0.000000e+00 : f32
    %cst_23 = arith.constant 1.500000e+01 : f32
    %56 = vector.broadcast %cst_22 : f32 to vector<1x256xf32>
    %57 = arith.maximumf %56, %55 : vector<1x256xf32>
    %58 = vector.broadcast %cst_23 : f32 to vector<1x256xf32>
    %59 = arith.minimumf %58, %57 : vector<1x256xf32>
    %60 = vector.extract_strided_slice %3 {offsets = [1, 0], sizes = [1, 256], strides = [1, 1]} : vector<2x256xf32> to vector<1x256xf32>
    %cst_24 = arith.constant 1.000000e+00 : f32
    %61 = vector.broadcast %cst_24 : f32 to vector<1x256xf32>
    %62 = arith.addf %60, %61 : vector<1x256xf32>
    %cst_25 = arith.constant 1.600000e+01 : f32
    %63 = vector.broadcast %cst_25 : f32 to vector<1x256xf32>
    %64 = arith.mulf %62, %63 : vector<1x256xf32>
    %cst_26 = arith.constant 1.000000e+00 : f32
    %65 = vector.broadcast %cst_26 : f32 to vector<1x256xf32>
    %66 = arith.subf %64, %65 : vector<1x256xf32>
    %cst_27 = arith.constant 5.000000e-01 : f32
    %67 = vector.broadcast %cst_27 : f32 to vector<1x256xf32>
    %68 = arith.mulf %66, %67 : vector<1x256xf32>
    %cst_28 = arith.constant -5.000000e-01 : f32
    %69 = vector.broadcast %cst_28 : f32 to vector<1x256xf32>
    %70 = arith.subf %68, %69 : vector<1x256xf32>
    %71 = math.absf %70 : vector<1x256xf32>
    %cst_29 = arith.constant 1.600000e+01 : f32
    %72 = vector.broadcast %cst_29 : f32 to vector<1x256xf32>
    %73 = arith.remf %71, %72 : vector<1x256xf32>
    %cst_30 = arith.constant 0.000000e+00 : f32
    %74 = vector.broadcast %cst_30 : f32 to vector<1x256xf32>
    %75 = arith.cmpf one, %73, %74 : vector<1x256xf32>
    %cst_31 = arith.constant 0.000000e+00 : f32
    %76 = vector.broadcast %cst_31 : f32 to vector<1x256xf32>
    %77 = arith.cmpf olt, %73, %76 : vector<1x256xf32>
    %cst_32 = arith.constant 0.000000e+00 : f32
    %78 = arith.cmpf olt, %cst_29, %cst_32 : f32
    %79 = vector.broadcast %78 : i1 to vector<1x256xi1>
    %80 = vector.broadcast %79 : vector<1x256xi1> to vector<1x256xi1>
    %81 = arith.xori %77, %80 : vector<1x256xi1>
    %82 = arith.andi %81, %75 : vector<1x256xi1>
    %83 = vector.broadcast %cst_29 : f32 to vector<1x256xf32>
    %84 = arith.addf %73, %83 : vector<1x256xf32>
    %85 = arith.select %82, %84, %73 : vector<1x256xi1>, vector<1x256xf32>
    %cst_33 = arith.constant 1.600000e+01 : f32
    %86 = vector.broadcast %cst_33 : f32 to vector<1x256xf32>
    %87 = arith.divf %71, %86 : vector<1x256xf32>
    %88 = math.floor %87 : vector<1x256xf32>
    %cst_34 = arith.constant 2.000000e+00 : f32
    %89 = vector.broadcast %cst_34 : f32 to vector<1x256xf32>
    %90 = arith.remf %88, %89 : vector<1x256xf32>
    %cst_35 = arith.constant 0.000000e+00 : f32
    %91 = vector.broadcast %cst_35 : f32 to vector<1x256xf32>
    %92 = arith.cmpf one, %90, %91 : vector<1x256xf32>
    %cst_36 = arith.constant 0.000000e+00 : f32
    %93 = vector.broadcast %cst_36 : f32 to vector<1x256xf32>
    %94 = arith.cmpf olt, %90, %93 : vector<1x256xf32>
    %cst_37 = arith.constant 0.000000e+00 : f32
    %95 = arith.cmpf olt, %cst_34, %cst_37 : f32
    %96 = vector.broadcast %95 : i1 to vector<1x256xi1>
    %97 = vector.broadcast %96 : vector<1x256xi1> to vector<1x256xi1>
    %98 = arith.xori %94, %97 : vector<1x256xi1>
    %99 = arith.andi %98, %92 : vector<1x256xi1>
    %100 = vector.broadcast %cst_34 : f32 to vector<1x256xf32>
    %101 = arith.addf %90, %100 : vector<1x256xf32>
    %102 = arith.select %99, %101, %90 : vector<1x256xi1>, vector<1x256xf32>
    %cst_38 = arith.constant 0.000000e+00 : f32
    %103 = vector.broadcast %cst_38 : f32 to vector<1x256xf32>
    %104 = arith.cmpf oeq, %102, %103 : vector<1x256xf32>
    %cst_39 = arith.constant -5.000000e-01 : f32
    %105 = vector.broadcast %cst_39 : f32 to vector<1x256xf32>
    %106 = arith.addf %85, %105 : vector<1x256xf32>
    %cst_40 = arith.constant 1.600000e+01 : f32
    %107 = vector.broadcast %cst_40 : f32 to vector<1x256xf32>
    %108 = arith.subf %107, %85 : vector<1x256xf32>
    %cst_41 = arith.constant -5.000000e-01 : f32
    %109 = vector.broadcast %cst_41 : f32 to vector<1x256xf32>
    %110 = arith.addf %108, %109 : vector<1x256xf32>
    %111 = arith.select %104, %106, %110 : vector<1x256xi1>, vector<1x256xf32>
    %cst_42 = arith.constant 0.000000e+00 : f32
    %cst_43 = arith.constant 1.500000e+01 : f32
    %112 = vector.broadcast %cst_42 : f32 to vector<1x256xf32>
    %113 = arith.maximumf %112, %111 : vector<1x256xf32>
    %114 = vector.broadcast %cst_43 : f32 to vector<1x256xf32>
    %115 = arith.minimumf %114, %113 : vector<1x256xf32>
    %116 = math.floor %59 : vector<1x256xf32>
    %117 = math.floor %115 : vector<1x256xf32>
    %118 = arith.subf %59, %116 : vector<1x256xf32>
    %119 = arith.subf %115, %117 : vector<1x256xf32>
    %120 = arith.fptosi %116 : vector<1x256xf32> to vector<1x256xi32>
    %121 = arith.fptosi %117 : vector<1x256xf32> to vector<1x256xi32>
    %c1_i32 = arith.constant 1 : i32
    %122 = vector.broadcast %c1_i32 : i32 to vector<1x256xi32>
    %123 = arith.addi %120, %122 : vector<1x256xi32>
    %c15_i32 = arith.constant 15 : i32
    %124 = vector.broadcast %c15_i32 : i32 to vector<1x256xi32>
    %125 = arith.minsi %123, %124 : vector<1x256xi32>
    %c1_i32_44 = arith.constant 1 : i32
    %126 = vector.broadcast %c1_i32_44 : i32 to vector<1x256xi32>
    %127 = arith.addi %121, %126 : vector<1x256xi32>
    %c15_i32_45 = arith.constant 15 : i32
    %128 = vector.broadcast %c15_i32_45 : i32 to vector<1x256xi32>
    %129 = arith.minsi %127, %128 : vector<1x256xi32>
    %130 = tpu.iota {dimensions = array<i32: 0>} : vector<16x256xi32>
    %131 = tpu.iota {dimensions = array<i32: 0>} : vector<16x256xi32>
    %132 = vector.broadcast %120 : vector<1x256xi32> to vector<16x256xi32>
    %133 = arith.cmpi eq, %130, %132 : vector<16x256xi32>
    %cst_46 = arith.constant 1.000000e+00 : f32
    %134 = vector.broadcast %cst_46 : f32 to vector<1x256xf32>
    %135 = arith.subf %134, %118 : vector<1x256xf32>
    %cst_47 = arith.constant 0.000000e+00 : f32
    %136 = vector.shape_cast %135 : vector<1x256xf32> to vector<1x256xf32>
    %137 = vector.broadcast %136 : vector<1x256xf32> to vector<16x256xf32>
    %138 = vector.broadcast %cst_47 : f32 to vector<16x256xf32>
    %139 = arith.select %133, %137, %138 : vector<16x256xi1>, vector<16x256xf32>
    %140 = vector.broadcast %125 : vector<1x256xi32> to vector<16x256xi32>
    %141 = arith.cmpi eq, %130, %140 : vector<16x256xi32>
    %cst_48 = arith.constant 0.000000e+00 : f32
    %142 = vector.shape_cast %118 : vector<1x256xf32> to vector<1x256xf32>
    %143 = vector.broadcast %142 : vector<1x256xf32> to vector<16x256xf32>
    %144 = vector.broadcast %cst_48 : f32 to vector<16x256xf32>
    %145 = arith.select %141, %143, %144 : vector<16x256xi1>, vector<16x256xf32>
    %146 = arith.addf %139, %145 : vector<16x256xf32>
    %147 = vector.broadcast %121 : vector<1x256xi32> to vector<16x256xi32>
    %148 = arith.cmpi eq, %131, %147 : vector<16x256xi32>
    %cst_49 = arith.constant 1.000000e+00 : f32
    %149 = vector.broadcast %cst_49 : f32 to vector<1x256xf32>
    %150 = arith.subf %149, %119 : vector<1x256xf32>
    %cst_50 = arith.constant 0.000000e+00 : f32
    %151 = vector.shape_cast %150 : vector<1x256xf32> to vector<1x256xf32>
    %152 = vector.broadcast %151 : vector<1x256xf32> to vector<16x256xf32>
    %153 = vector.broadcast %cst_50 : f32 to vector<16x256xf32>
    %154 = arith.select %148, %152, %153 : vector<16x256xi1>, vector<16x256xf32>
    %155 = vector.broadcast %129 : vector<1x256xi32> to vector<16x256xi32>
    %156 = arith.cmpi eq, %131, %155 : vector<16x256xi32>
    %cst_51 = arith.constant 0.000000e+00 : f32
    %157 = vector.shape_cast %119 : vector<1x256xf32> to vector<1x256xf32>
    %158 = vector.broadcast %157 : vector<1x256xf32> to vector<16x256xf32>
    %159 = vector.broadcast %cst_51 : f32 to vector<16x256xf32>
    %160 = arith.select %156, %158, %159 : vector<16x256xi1>, vector<16x256xf32>
    %161 = arith.addf %154, %160 : vector<16x256xf32>
    %cst_52 = arith.constant dense<0.000000e+00> : vector<48x256xf32>
    %162 = tpu.matmul %1, %146, %cst_52 {dimension_numbers = #tpu.dot_dimension_numbers<[1], [0], [0], [1], [0, 0, 1, 1], [], []>} : vector<48x16xf32>, vector<16x256xf32>, vector<48x256xf32> -> vector<48x256xf32>
    %163 = tpu.concatenate %161, %161, %161 in 0 : vector<16x256xf32>, vector<16x256xf32>, vector<16x256xf32> -> vector<48x256xf32>
    %164 = arith.mulf %162, %163 : vector<48x256xf32>
    %c0_53 = arith.constant 0 : index
    %c0_54 = arith.constant 0 : index
    %165 = vector.load %arg3[%c0_53, %c0_54] : memref<8x48xf32, #tpu.memory_space<vmem>>, vector<8x48xf32>
    %cst_55 = arith.constant dense<0.000000e+00> : vector<8x256xf32>
    %166 = tpu.matmul %165, %164, %cst_55 {dimension_numbers = #tpu.dot_dimension_numbers<[1], [0], [0], [1], [0, 0, 1, 1], [], []>} : vector<8x48xf32>, vector<48x256xf32>, vector<8x256xf32> -> vector<8x256xf32>
    %c0_56 = arith.constant 0 : index
    %c0_57 = arith.constant 0 : index
    %167 = vector.load %arg4[%c0_56, %c0_57] : memref<8x1xf32, #tpu.memory_space<vmem>>, vector<8x1xf32>
    %168 = vector.broadcast %167 : vector<8x1xf32> to vector<8x256xf32>
    %169 = arith.addf %166, %168 : vector<8x256xf32>
    %170 = vector.extract_strided_slice %169 {offsets = [0, 0], sizes = [4, 256], strides = [1, 1]} : vector<8x256xf32> to vector<4x256xf32>
    %cst_58 = arith.constant 0.000000e+00 : f32
    %171 = vector.broadcast %cst_58 : f32 to vector<4x256xf32>
    %172 = arith.maximumf %170, %171 : vector<4x256xf32>
    %173 = vector.extract_strided_slice %169 {offsets = [4, 0], sizes = [4, 256], strides = [1, 1]} : vector<8x256xf32> to vector<4x256xf32>
    %c0_59 = arith.constant 0 : index
    %c0_60 = arith.constant 0 : index
    %174 = vector.load %arg5[%c0_59, %c0_60] : memref<4x4xf32, #tpu.memory_space<vmem>>, vector<4x4xf32>
    %cst_61 = arith.constant dense<0.000000e+00> : vector<4x256xf32>
    %175 = tpu.matmul %174, %172, %cst_61 {dimension_numbers = #tpu.dot_dimension_numbers<[1], [0], [0], [1], [0, 0, 1, 1], [], []>} : vector<4x4xf32>, vector<4x256xf32>, vector<4x256xf32> -> vector<4x256xf32>
    %c0_62 = arith.constant 0 : index
    %c0_63 = arith.constant 0 : index
    %176 = vector.load %arg6[%c0_62, %c0_63] : memref<4x1xf32, #tpu.memory_space<vmem>>, vector<4x1xf32>
    %177 = vector.broadcast %176 : vector<4x1xf32> to vector<4x256xf32>
    %178 = arith.addf %175, %177 : vector<4x256xf32>
    %179 = arith.addf %178, %173 : vector<4x256xf32>
    %cst_64 = arith.constant 0.000000e+00 : f32
    %180 = vector.broadcast %cst_64 : f32 to vector<4x256xf32>
    %181 = arith.maximumf %179, %180 : vector<4x256xf32>
    %c0_65 = arith.constant 0 : index
    %c0_66 = arith.constant 0 : index
    %182 = vector.load %arg7[%c0_65, %c0_66] : memref<3x4xf32, #tpu.memory_space<vmem>>, vector<3x4xf32>
    %cst_67 = arith.constant dense<0.000000e+00> : vector<3x256xf32>
    %183 = tpu.matmul %182, %181, %cst_67 {dimension_numbers = #tpu.dot_dimension_numbers<[1], [0], [0], [1], [0, 0, 1, 1], [], []>} : vector<3x4xf32>, vector<4x256xf32>, vector<3x256xf32> -> vector<3x256xf32>
    %c0_68 = arith.constant 0 : index
    %c0_69 = arith.constant 0 : index
    %184 = vector.load %arg8[%c0_68, %c0_69] : memref<3x1xf32, #tpu.memory_space<vmem>>, vector<3x1xf32>
    %185 = vector.broadcast %184 : vector<3x1xf32> to vector<3x256xf32>
    %186 = arith.addf %183, %185 : vector<3x256xf32>
    %c0_70 = arith.constant 0 : index
    %c0_71 = arith.constant 0 : index
    %c0_72 = arith.constant 0 : index
    %187 = vector.load %arg9[%c0_70, %c0_71, %c0_72] : memref<1x3x256xf32, #tpu.memory_space<vmem>>, vector<1x3x256xf32>
    %188 = vector.shape_cast %187 : vector<1x3x256xf32> to vector<3x256xf32>
    %189 = vector.shape_cast %186 : vector<3x256xf32> to vector<1x3x256xf32>
    tpu.vector_store %arg9[%c0_70, %c0_71, %c0_72], %189 {strides = array<i32>} : memref<1x3x256xf32, #tpu.memory_space<vmem>>, vector<1x3x256xf32>,
    return
  }
  func.func @transform_0(%arg0: i32) -> (i32, i32, i32) {
    %c0_i32 = arith.constant 0 : i32
    %c0_i32_0 = arith.constant 0 : i32
    %c0_i32_1 = arith.constant 0 : i32
    return %arg0, %c0_i32, %c0_i32_0 : i32, i32, i32
  }
  func.func @transform_1(%arg0: i32) -> (i32, i32, i32) {
    %c0_i32 = arith.constant 0 : i32
    %c0_i32_0 = arith.constant 0 : i32
    %c0_i32_1 = arith.constant 0 : i32
    return %arg0, %c0_i32, %c0_i32_0 : i32, i32, i32
  }
  func.func @transform_2(%arg0: i32) -> (i32, i32) {
    %c0_i32 = arith.constant 0 : i32
    %c0_i32_0 = arith.constant 0 : i32
    %c0_i32_1 = arith.constant 0 : i32
    return %c0_i32, %c0_i32_0 : i32, i32
  }
  func.func @transform_3(%arg0: i32) -> (i32, i32) {
    %c0_i32 = arith.constant 0 : i32
    %c0_i32_0 = arith.constant 0 : i32
    %c0_i32_1 = arith.constant 0 : i32
    return %c0_i32, %c0_i32_0 : i32, i32
  }
  func.func @transform_4(%arg0: i32) -> (i32, i32) {
    %c0_i32 = arith.constant 0 : i32
    %c0_i32_0 = arith.constant 0 : i32
    %c0_i32_1 = arith.constant 0 : i32
    return %c0_i32, %c0_i32_0 : i32, i32
  }
  func.func @transform_5(%arg0: i32) -> (i32, i32) {
    %c0_i32 = arith.constant 0 : i32
    %c0_i32_0 = arith.constant 0 : i32
    %c0_i32_1 = arith.constant 0 : i32
    return %c0_i32, %c0_i32_0 : i32, i32
  }
  func.func @transform_6(%arg0: i32) -> (i32, i32) {
    %c0_i32 = arith.constant 0 : i32
    %c0_i32_0 = arith.constant 0 : i32
    %c0_i32_1 = arith.constant 0 : i32
    return %c0_i32, %c0_i32_0 : i32, i32
  }
  func.func @transform_7(%arg0: i32) -> (i32, i32) {
    %c0_i32 = arith.constant 0 : i32
    %c0_i32_0 = arith.constant 0 : i32
    %c0_i32_1 = arith.constant 0 : i32
    return %c0_i32, %c0_i32_0 : i32, i32
  }
  func.func @transform_8(%arg0: i32) -> (i32, i32, i32) {
    %c0_i32 = arith.constant 0 : i32
    %c0_i32_0 = arith.constant 0 : i32
    %c0_i32_1 = arith.constant 0 : i32
    return %arg0, %c0_i32, %c0_i32_0 : i32, i32, i32
  }
}

</mosaic_0001>

<llo_original>
// kernel: generator_forward.1
$region0: #{generator_forward.1}
  #allocation0 [shape = 'u32[]', space=smem, size = 0x4, offset = 0x4, fixed_abs, tag = 'smem constant byte address 0x4 - core index']
  #allocation1 [shape = 'u32[144,128]{1,0:T(1,128)}', space=vmem, size = 0x12000, scoped, tag = 'internal scratch']
  %s0 = inlined_call_operand.vmem [shape: f32[2,48,16], index: 0, kind: input, shape index: {}]
  %s1 = inlined_call_operand.vmem [shape: f32[2,2,256], index: 1, kind: input, shape index: {}]
  %s2 = inlined_call_operand.vmem [shape: f32[8,48], index: 2, kind: input, shape index: {}]
  %s3 = inlined_call_operand.vmem [shape: f32[8,1], index: 3, kind: input, shape index: {}]
  %s4 = inlined_call_operand.vmem [shape: f32[4,4], index: 4, kind: input, shape index: {}]
  %s5 = inlined_call_operand.vmem [shape: f32[4,1], index: 5, kind: input, shape index: {}]
  %s6 = inlined_call_operand.vmem [shape: f32[3,4], index: 6, kind: input, shape index: {}]
  %s7 = inlined_call_operand.vmem [shape: f32[3,1], index: 7, kind: input, shape index: {}]
  %s8 = inlined_call_operand.vmem [shape: f32[2,3,256], index: 8, kind: output, shape index: {}]
  %s9 = sld [smem:[#allocation0]]
  $region65: #{generator_forward.1} parent=0
    _
  %s11 = ssub.s32 1, %s9
  %s12 = scalar_select 0, %s11, %s9
  loop: start=0, step=1, limit=4
  $region2: #{generator_forward.1} parent=0 // loop_pre_header
    _
  $region3: #{generator_forward.1} parent=0 // loop_header
    %s14 = sphi 0, %s18
    %p15 = scmp.ge.s32.totalorder %s14, 4
    %s24 = sphi 0, %s26
    %s27 = sphi 0, %s24
    %s28 = sphi 0, %s27
    %s44 = sphi 0, %s28
    %s50 = sphi 0, %s52
    %s53 = sphi 0, %s50
    %s54 = sphi 0, %s53
    %s70 = sphi 0, %s54
    %s74 = sphi 0, %s74
    %s76 = sphi 0, %s74
    %s77 = sphi 0, %s76
    %s91 = sphi 0, %s77
    %s95 = sphi 0, %s95
    %s97 = sphi 0, %s95
    %s98 = sphi 0, %s97
    %s112 = sphi 0, %s98
    %s116 = sphi 0, %s116
    %s118 = sphi 0, %s116
    %s119 = sphi 0, %s118
    %s133 = sphi 0, %s119
    %s137 = sphi 0, %s137
    %s139 = sphi 0, %s137
    %s140 = sphi 0, %s139
    %s154 = sphi 0, %s140
    %s158 = sphi 0, %s158
    %s160 = sphi 0, %s158
    %s161 = sphi 0, %s160
    %s175 = sphi 0, %s161
    %s179 = sphi 0, %s179
    %s181 = sphi 0, %s179
    %s182 = sphi 0, %s181
    %s196 = sphi 0, %s182
    %s202 = sphi 0, %s204
    %s205 = sphi 0, %s202
    %s206 = sphi 0, %s205
    %s222 = sphi 0, %s206
  $region4: #{generator_forward.1} parent=0 // loop_header_branch
    %17 = sbr.rel (%p15) target = $region8
  $region5: #{generator_forward.1} parent=0 // loop_body
    %s19 = ssub.s32 %s14, 1
    %s20 = ssub.s32 %s14, 2
    %s21 = sadd.s32 %s14, 1
    %s22 = ssub.s32 %s14, %s21
    %p23 = scmp.eq.s32.totalorder %s22, 0
    %s25 = sadd.s32 %s24, 1
    %s26 = scalar_select %p23, %s24, %s25
    %p29 = pneg %p23
    %p30 = scmp.eq.s32.totalorder %s14, 1
    %p31 = por %p29, %p30
    %p32 = scmp.ne.s32.totalorder %s24, %s27
    %p33 = scmp.eq.s32.totalorder %s14, 0
    %p34 = por %p32, %p33
    %p35 = scmp.ne.s32.totalorder %s24, %s27
    %p36 = scmp.eq.s32.totalorder %s19, 1
    %p37 = por %p35, %p36
    %p38 = scmp.ne.s32.totalorder %s27, %s28
    %p39 = scmp.eq.s32.totalorder %s19, 0
    %p40 = por %p38, %p39
    %p41 = scmp.ne.s32.totalorder %s27, %s28
    %p42 = scmp.eq.s32.totalorder %s20, 1
    %p43 = por %p41, %p42
    %p45 = scmp.ne.s32.totalorder %s28, %s44
    %p46 = scmp.eq.s32.totalorder %s20, 0
    %p47 = por %p45, %p46
    %s48 = ssub.s32 %s14, %s21
    %p49 = scmp.eq.s32.totalorder %s48, 0
    %s51 = sadd.s32 %s50, 1
    %s52 = scalar_select %p49, %s50, %s51
    %p55 = pneg %p49
    %p56 = scmp.eq.s32.totalorder %s14, 1
    %p57 = por %p55, %p56
    %p58 = scmp.ne.s32.totalorder %s50, %s53
    %p59 = scmp.eq.s32.totalorder %s14, 0
    %p60 = por %p58, %p59
    %p61 = scmp.ne.s32.totalorder %s50, %s53
    %p62 = scmp.eq.s32.totalorder %s19, 1
    %p63 = por %p61, %p62
    %p64 = scmp.ne.s32.totalorder %s53, %s54
    %p65 = scmp.eq.s32.totalorder %s19, 0
    %p66 = por %p64, %p65
    %p67 = scmp.ne.s32.totalorder %s53, %s54
    %p68 = scmp.eq.s32.totalorder %s20, 1
    %p69 = por %p67, %p68
    %p71 = scmp.ne.s32.totalorder %s54, %s70
    %p72 = scmp.eq.s32.totalorder %s20, 0
    %p73 = por %p71, %p72
    %s75 = sadd.s32 %s74, 1
    %p78 = scmp.eq.s32.totalorder %s14, 1
    %p79 = scmp.ne.s32.totalorder %s74, %s76
    %p80 = scmp.eq.s32.totalorder %s14, 0
    %p81 = por %p79, %p80
    %p82 = scmp.ne.s32.totalorder %s74, %s76
    %p83 = scmp.eq.s32.totalorder %s19, 1
    %p84 = por %p82, %p83
    %p85 = scmp.ne.s32.totalorder %s76, %s77
    %p86 = scmp.eq.s32.totalorder %s19, 0
    %p87 = por %p85, %p86
    %p88 = scmp.ne.s32.totalorder %s76, %s77
    %p89 = scmp.eq.s32.totalorder %s20, 1
    %p90 = por %p88, %p89
    %p92 = scmp.ne.s32.totalorder %s77, %s91
    %p93 = scmp.eq.s32.totalorder %s20, 0
    %p94 = por %p92, %p93
    %s96 = sadd.s32 %s95, 1
    %p99 = scmp.eq.s32.totalorder %s14, 1
    %p100 = scmp.ne.s32.totalorder %s95, %s97
    %p101 = scmp.eq.s32.totalorder %s14, 0
    %p102 = por %p100, %p101
    %p103 = scmp.ne.s32.totalorder %s95, %s97
    %p104 = scmp.eq.s32.totalorder %s19, 1
    %p105 = por %p103, %p104
    %p106 = scmp.ne.s32.totalorder %s97, %s98
    %p107 = scmp.eq.s32.totalorder %s19, 0
    %p108 = por %p106, %p107
    %p109 = scmp.ne.s32.totalorder %s97, %s98
    %p110 = scmp.eq.s32.totalorder %s20, 1
    %p111 = por %p109, %p110
    %p113 = scmp.ne.s32.totalorder %s98, %s112
    %p114 = scmp.eq.s32.totalorder %s20, 0
    %p115 = por %p113, %p114
    %s117 = sadd.s32 %s116, 1
    %p120 = scmp.eq.s32.totalorder %s14, 1
    %p121 = scmp.ne.s32.totalorder %s116, %s118
    %p122 = scmp.eq.s32.totalorder %s14, 0
    %p123 = por %p121, %p122
    %p124 = scmp.ne.s32.totalorder %s116, %s118
    %p125 = scmp.eq.s32.totalorder %s19, 1
    %p126 = por %p124, %p125
    %p127 = scmp.ne.s32.totalorder %s118, %s119
    %p128 = scmp.eq.s32.totalorder %s19, 0
    %p129 = por %p127, %p128
    %p130 = scmp.ne.s32.totalorder %s118, %s119
    %p131 = scmp.eq.s32.totalorder %s20, 1
    %p132 = por %p130, %p131
    %p134 = scmp.ne.s32.totalorder %s119, %s133
    %p135 = scmp.eq.s32.totalorder %s20, 0
    %p136 = por %p134, %p135
    %s138 = sadd.s32 %s137, 1
    %p141 = scmp.eq.s32.totalorder %s14, 1
    %p142 = scmp.ne.s32.totalorder %s137, %s139
    %p143 = scmp.eq.s32.totalorder %s14, 0
    %p144 = por %p142, %p143
    %p145 = scmp.ne.s32.totalorder %s137, %s139
    %p146 = scmp.eq.s32.totalorder %s19, 1
    %p147 = por %p145, %p146
    %p148 = scmp.ne.s32.totalorder %s139, %s140
    %p149 = scmp.eq.s32.totalorder %s19, 0
    %p150 = por %p148, %p149
    %p151 = scmp.ne.s32.totalorder %s139, %s140
    %p152 = scmp.eq.s32.totalorder %s20, 1
    %p153 = por %p151, %p152
    %p155 = scmp.ne.s32.totalorder %s140, %s154
    %p156 = scmp.eq.s32.totalorder %s20, 0
    %p157 = por %p155, %p156
    %s159 = sadd.s32 %s158, 1
    %p162 = scmp.eq.s32.totalorder %s14, 1
    %p163 = scmp.ne.s32.totalorder %s158, %s160
    %p164 = scmp.eq.s32.totalorder %s14, 0
    %p165 = por %p163, %p164
    %p166 = scmp.ne.s32.totalorder %s158, %s160
    %p167 = scmp.eq.s32.totalorder %s19, 1
    %p168 = por %p166, %p167
    %p169 = scmp.ne.s32.totalorder %s160, %s161
    %p170 = scmp.eq.s32.totalorder %s19, 0
    %p171 = por %p169, %p170
    %p172 = scmp.ne.s32.totalorder %s160, %s161
    %p173 = scmp.eq.s32.totalorder %s20, 1
    %p174 = por %p172, %p173
    %p176 = scmp.ne.s32.totalorder %s161, %s175
    %p177 = scmp.eq.s32.totalorder %s20, 0
    %p178 = por %p176, %p177
    %s180 = sadd.s32 %s179, 1
    %p183 = scmp.eq.s32.totalorder %s14, 1
    %p184 = scmp.ne.s32.totalorder %s179, %s181
    %p185 = scmp.eq.s32.totalorder %s14, 0
    %p186 = por %p184, %p185
    %p187 = scmp.ne.s32.totalorder %s179, %s181
    %p188 = scmp.eq.s32.totalorder %s19, 1
    %p189 = por %p187, %p188
    %p190 = scmp.ne.s32.totalorder %s181, %s182
    %p191 = scmp.eq.s32.totalorder %s19, 0
    %p192 = por %p190, %p191
    %p193 = scmp.ne.s32.totalorder %s181, %s182
    %p194 = scmp.eq.s32.totalorder %s20, 1
    %p195 = por %p193, %p194
    %p197 = scmp.ne.s32.totalorder %s182, %s196
    %p198 = scmp.eq.s32.totalorder %s20, 0
    %p199 = por %p197, %p198
    %s200 = ssub.s32 %s14, %s21
    %p201 = scmp.eq.s32.totalorder %s200, 0
    %s203 = sadd.s32 %s202, 1
    %s204 = scalar_select %p201, %s202, %s203
    %p207 = pneg %p201
    %p208 = scmp.eq.s32.totalorder %s14, 1
    %p209 = por %p207, %p208
    %p210 = scmp.ne.s32.totalorder %s202, %s205
    %p211 = scmp.eq.s32.totalorder %s14, 0
    %p212 = por %p210, %p211
    %p213 = scmp.ne.s32.totalorder %s202, %s205
    %p214 = scmp.eq.s32.totalorder %s19, 1
    %p215 = por %p213, %p214
    %p216 = scmp.ne.s32.totalorder %s205, %s206
    %p217 = scmp.eq.s32.totalorder %s19, 0
    %p218 = por %p216, %p217
    %p219 = scmp.ne.s32.totalorder %s205, %s206
    %p220 = scmp.eq.s32.totalorder %s20, 1
    %p221 = por %p219, %p220
    %p223 = scmp.ne.s32.totalorder %s206, %s222
    %p224 = scmp.eq.s32.totalorder %s20, 0
    %p225 = por %p223, %p224
    %p226 = scmp.le.s32.totalorder 1, %s14
    %p227 = scmp.lt.s32.totalorder %s14, 3
    %p228 = pnand %p226, %p227
    %p229 = pneg %p228
    // Predicated region
    $region9: #{generator_forward.1} parent=5 // pred_check
      _
    $region10: #{generator_forward.1} parent=5 // pred_check_branch
      %231 = sbr.rel (%p228) target = $region12
    $region11: #{generator_forward.1} parent=5 // pred_region
      %s232 = ssub.s32 %s14, 1
      // Predicated region
      $region13: #{generator_forward.1} parent=11 // pred_check
        %p233 = pneg %p87
      $region14: #{generator_forward.1} parent=11 // pred_check_branch
        %235 = sbr.rel (%p233) target = $region16
      $region15: #{generator_forward.1} parent=11 // pred_region
        _
      $region16: #{generator_forward.1} parent=11 // pred_fallthru
        _
      // Predicated region
      $region17: #{generator_forward.1} parent=11 // pred_check
        %p236 = pneg %p108
      $region18: #{generator_forward.1} parent=11 // pred_check_branch
        %238 = sbr.rel (%p236) target = $region20
      $region19: #{generator_forward.1} parent=11 // pred_region
        _
      $region20: #{generator_forward.1} parent=11 // pred_fallthru
        _
      // Predicated region
      $region21: #{generator_forward.1} parent=11 // pred_check
        %p239 = pneg %p129
      $region22: #{generator_forward.1} parent=11 // pred_check_branch
        %241 = sbr.rel (%p239) target = $region24
      $region23: #{generator_forward.1} parent=11 // pred_region
        _
      $region24: #{generator_forward.1} parent=11 // pred_fallthru
        _
      // Predicated region
      $region25: #{generator_forward.1} parent=11 // pred_check
        %p242 = pneg %p150
      $region26: #{generator_forward.1} parent=11 // pred_check_branch
        %244 = sbr.rel (%p242) target = $region28
      $region27: #{generator_forward.1} parent=11 // pred_region
        _
      $region28: #{generator_forward.1} parent=11 // pred_fallthru
        _
      // Predicated region
      $region29: #{generator_forward.1} parent=11 // pred_check
        %p245 = pneg %p171
      $region30: #{generator_forward.1} parent=11 // pred_check_branch
        %247 = sbr.rel (%p245) target = $region32
      $region31: #{generator_forward.1} parent=11 // pred_region
        _
      $region32: #{generator_forward.1} parent=11 // pred_fallthru
        _
      // Predicated region
      $region33: #{generator_forward.1} parent=11 // pred_check
        %p248 = pneg %p192
      $region34: #{generator_forward.1} parent=11 // pred_check_branch
        %250 = sbr.rel (%p248) target = $region36
      $region35: #{generator_forward.1} parent=11 // pred_region
        _
      $region36: #{generator_forward.1} parent=11 // pred_fallthru
        _
    $region12: #{generator_forward.1} parent=5 // pred_fallthru
      _
    %p251 = scmp.lt.s32.totalorder %s14, 2
    // Predicated region
    $region37: #{generator_forward.1} parent=5 // pred_check
      %p252 = pneg %p251
    $region38: #{generator_forward.1} parent=5 // pred_check_branch
      %254 = sbr.rel (%p252) target = $region40
    $region39: #{generator_forward.1} parent=5 // pred_region
      // Predicated region
      $region41: #{generator_forward.1} parent=39 // pred_check
        %p255 = pneg %p34
      $region42: #{generator_forward.1} parent=39 // pred_check_branch
        %257 = sbr.rel (%p255) target = $region44
      $region43: #{generator_forward.1} parent=39 // pred_region
        %p258 = scmp.lt.s32.totalorder %s14, 1
        %s259 = scalar_select %p258, %s14, 1
        %s260 = smul.addr %s259, 6
        %s261 = smul.addr %s260, 8
        %s262 = scalar_lea.vmem %s0, %s261
      $region44: #{generator_forward.1} parent=39 // pred_fallthru
        _
      // Predicated region
      $region45: #{generator_forward.1} parent=39 // pred_check
        %p263 = pneg %p60
      $region46: #{generator_forward.1} parent=39 // pred_check_branch
        %265 = sbr.rel (%p263) target = $region48
      $region47: #{generator_forward.1} parent=39 // pred_region
        %p266 = scmp.lt.s32.totalorder %s14, 1
        %s267 = scalar_select %p266, %s14, 1
        %s268 = smul.addr %s267, 2
        %s269 = smul.addr %s268, 2
        %s270 = scalar_lea.vmem %s1, %s269
      $region48: #{generator_forward.1} parent=39 // pred_fallthru
        _
    $region40: #{generator_forward.1} parent=5 // pred_fallthru
      _
    %p271 = scmp.le.s32.totalorder 1, %s14
    %p272 = scmp.lt.s32.totalorder %s14, 3
    %p273 = pnand %p271, %p272
    %p274 = pneg %p273
    // Predicated region
    $region49: #{generator_forward.1} parent=5 // pred_check
      _
    $region50: #{generator_forward.1} parent=5 // pred_check_branch
      %276 = sbr.rel (%p273) target = $region52
    $region51: #{generator_forward.1} parent=5 // pred_region
      %s277 = ssub.s32 %s14, 1
      %p278 = scmp.lt.s32.totalorder %s19, 1
      %s279 = scalar_select %p278, %s19, 1
      %s280 = smul.addr %s279, 6
      %s281 = smul.addr %s280, 8
      %s282 = scalar_lea.vmem %s0, %s281
      %p283 = pneg %p40
      %p284 = pneg %p37
      %p285 = scmp.lt.s32.totalorder %s19, 1
      %s286 = scalar_select %p285, %s19, 1
      %s287 = smul.addr %s286, 2
      %s288 = smul.addr %s287, 2
      %s289 = scalar_lea.vmem %s1, %s288
      %p290 = pneg %p66
      %p291 = pneg %p63
      %p292 = pneg %p87
      %p293 = pneg %p84
      %p294 = pneg %p108
      %p295 = pneg %p105
      %p296 = pneg %p129
      %p297 = pneg %p126
      %p298 = pneg %p150
      %p299 = pneg %p147
      %p300 = pneg %p171
      %p301 = pneg %p168
      %p302 = pneg %p192
      %p303 = pneg %p189
      %p304 = pneg %p218
      %p305 = pneg %p215
      %p306 = scmp.lt.s32.totalorder %s19, 1
      %s307 = scalar_select %p306, %s19, 1
      %s308 = smul.addr %s307, 2
      %s309 = smul.addr %s308, 4
      %s310 = scalar_lea.vmem %s8, %s309
      %p311 = scmp.lt.s32.totalorder %s19, 1
      %s312 = scalar_select %p311, %s19, 1
      %s313 = smul.addr %s312, 6
      %s314 = smul.addr %s313, 8
      %s315 = scalar_lea.vmem %s0, %s314
      %p316 = scmp.lt.s32.totalorder %s19, 1
      %s317 = scalar_select %p316, %s19, 1
      %s318 = smul.addr %s317, 2
      %s319 = smul.addr %s318, 2
      %s320 = scalar_lea.vmem %s1, %s319
      %p321 = scmp.lt.s32.totalorder %s19, 1
      %s322 = scalar_select %p321, %s19, 1
      %s323 = smul.addr %s322, 2
      %s324 = smul.addr %s323, 4
      %s325 = scalar_lea.vmem %s8, %s324
      %v326 = vld [vmem:[%s315] sm:$0xff]
      %v327 = vld [vmem:[%s315 + $0x8] sm:$0xff]
      %v328 = vld [vmem:[%s315 + $0x10] sm:$0xff]
      %v329 = vld [vmem:[%s315 + $0x18] sm:$0xff]
      %v330 = vld [vmem:[%s315 + $0x20] sm:$0xff]
      %v331 = vld [vmem:[%s315 + $0x28] sm:$0xff]
      %v332 = vld [vmem:[%s320] sm:$0xf]
      %v333 = vadd.f32 %v332, 1.0
      %v334 = vmul.f32 %v333, 16.0
      %v335 = vsub.f32 %v334, 1.0
      %v336 = vmul.f32 %v335, 0.5
      %v337 = vsub.f32 %v336, -0.5
      %v338 = vand.u32 2147483647, %v337
      %v339 = vand.u32 2147483647, %v338
      %v340 = vrcp.pop 16.0
      %v341 = vmul.f32 %v339, %v340
      %v342 = vfloor.f32 %v341
      %v343 = vmul.f32 %v342, 16.0
      %v344 = vsub.f32 %v339, %v343
      %vm345 = vcmp.eq.f32.partialorder %v344, 16.0
      %v346 = vsel %vm345, 0.0, %v344
      %v347 = vand.u32 2147483647, %v346
      %v348 = vand.u32 %v338, 2147483648
      %v349 = vor.u32 %v347, %v348
      %vm350 = vcmp.ne.f32.partialorder %v349, 0.0
      %vm351 = vcmp.lt.f32.partialorder %v349, 0.0
      %vm352 = vmand %vm351, %vm350
      %v353 = vadd.f32 %v349, 16.0
      %v354 = vsel %vm352, %v353, %v349
      %v355 = vrcp.pop 16.0
      %v356 = vmul.f32 %v338, %v355
      %v357 = vfloor.f32 %v356
      %v358 = vand.u32 2147483647, %v357
      %v359 = vrcp.pop 2.0
      %v360 = vmul.f32 %v358, %v359
      %v361 = vfloor.f32 %v360
      %v362 = vmul.f32 %v361, 2.0
      %v363 = vsub.f32 %v358, %v362
      %vm364 = vcmp.eq.f32.partialorder %v363, 2.0
      %v365 = vsel %vm364, 0.0, %v363
      %v366 = vand.u32 2147483647, %v365
      %v367 = vand.u32 %v357, 2147483648
      %v368 = vor.u32 %v366, %v367
      %vm369 = vcmp.ne.f32.partialorder %v368, 0.0
      %vm370 = vcmp.lt.f32.partialorder %v368, 0.0
      %vm371 = vmand %vm370, %vm369
      %v372 = vadd.f32 %v368, 2.0
      %v373 = vsel %vm371, %v372, %v368
      %vm374 = vcmp.eq.f32.partialorder %v373, 0.0
      %v375 = vadd.f32 %v354, -0.5
      %v376 = vsub.f32 16.0, %v354
      %v377 = vadd.f32 %v376, -0.5
      %v378 = vsel %vm374, %v375, %v377
      %v379 = vmax.f32 %v378, 0.0
      %v380 = vmin.f32 %v379, 15.0
      %v381 = vfloor.f32 %v380
      %v382 = vsub.f32 %v380, %v381
      %v383 = vcvt.f32.s32.to.zero.pseudo %v381
      %v384 = vadd.s32 %v383, 1
      %vm385 = vcmp.lt.s32.totalorder %v384, 15
      %v386 = vsel %vm385, %v384, 15
      %v387 = vlaneseq
      %v388 = vshrl.u32 %v387, 7
      %v389 = vadd.s32 %v388, 8
      %v390 = vlaneseq
      %v391 = vshrl.u32 %v390, 7
      %v392 = vsub.s32 0, %v391
      %v393 = vrot.slane %v383, %v392
      %v394 = vlaneseq
      %v395 = vshrl.u32 %v394, 7
      %v396 = vsub.s32 2, %v395
      %v397 = vrot.slane %v383, %v396
      %v398 = vlaneseq
      %v399 = vshrl.u32 %v398, 7
      %v400 = vsub.s32 0, %v399
      %v401 = vrot.slane %v393, %v400
      %v402 = vlaneseq
      %v403 = vshrl.u32 %v402, 7
      %v404 = vsub.s32 0, %v403
      %v405 = vrot.slane %v397, %v404
      %vm406 = vcmp.eq.s32.totalorder %v388, %v401
      %vm407 = vcmp.eq.s32.totalorder %v388, %v405
      %vm408 = vcmp.eq.s32.totalorder %v389, %v401
      %vm409 = vcmp.eq.s32.totalorder %v389, %v405
      %v410 = vsub.f32 1.0, %v382
      %v412 = vlaneseq
      %v413 = vshrl.u32 %v412, 7
      %v414 = vsub.s32 0, %v413
      %v415 = vrot.slane %v410, %v414
      %v416 = vlaneseq
      %v417 = vshrl.u32 %v416, 7
      %v418 = vsub.s32 2, %v417
      %v419 = vrot.slane %v410, %v418
      %v422 = vlaneseq
      %v423 = vshrl.u32 %v422, 7
      %v424 = vsub.s32 0, %v423
      %v425 = vrot.slane %v415, %v424
      %v426 = vlaneseq
      %v427 = vshrl.u32 %v426, 7
      %v428 = vsub.s32 0, %v427
      %v429 = vrot.slane %v419, %v428
      %v430 = vsel %vm406, %v425, 0.0
      %v431 = vsel %vm407, %v429, 0.0
      %v432 = vsel %vm408, %v425, 0.0
      %v433 = vsel %vm409, %v429, 0.0
      %v434 = vlaneseq
      %v435 = vshrl.u32 %v434, 7
      %v436 = vsub.s32 0, %v435
      %v437 = vrot.slane %v386, %v436
      %v438 = vlaneseq
      %v439 = vshrl.u32 %v438, 7
      %v440 = vsub.s32 2, %v439
      %v441 = vrot.slane %v386, %v440
      %v442 = vlaneseq
      %v443 = vshrl.u32 %v442, 7
      %v444 = vsub.s32 0, %v443
      %v445 = vrot.slane %v437, %v444
      %v446 = vlaneseq
      %v447 = vshrl.u32 %v446, 7
      %v448 = vsub.s32 0, %v447
      %v449 = vrot.slane %v441, %v448
      %vm450 = vcmp.eq.s32.totalorder %v388, %v445
      %vm451 = vcmp.eq.s32.totalorder %v388, %v449
      %vm452 = vcmp.eq.s32.totalorder %v389, %v445
      %vm453 = vcmp.eq.s32.totalorder %v389, %v449
      %v455 = vlaneseq
      %v456 = vshrl.u32 %v455, 7
      %v457 = vsub.s32 0, %v456
      %v458 = vrot.slane %v382, %v457
      %v459 = vlaneseq
      %v460 = vshrl.u32 %v459, 7
      %v461 = vsub.s32 2, %v460
      %v462 = vrot.slane %v382, %v461
      %v465 = vlaneseq
      %v466 = vshrl.u32 %v465, 7
      %v467 = vsub.s32 0, %v466
      %v468 = vrot.slane %v458, %v467
      %v469 = vlaneseq
      %v470 = vshrl.u32 %v469, 7
      %v471 = vsub.s32 0, %v470
      %v472 = vrot.slane %v462, %v471
      %v473 = vsel %vm450, %v468, 0.0
      %v474 = vsel %vm451, %v472, 0.0
      %v475 = vsel %vm452, %v468, 0.0
      %v476 = vsel %vm453, %v472, 0.0
      %v477 = vadd.f32 %v430, %v473
      %v478 = vadd.f32 %v431, %v474
      %v479 = vadd.f32 %v432, %v475
      %v480 = vadd.f32 %v433, %v476
      %v481 = vlaneseq
      %v482 = vshrl.u32 %v481, 7
      %v483 = vsub.s32 1, %v482
      %v484 = vrot.slane %v383, %v483
      %v485 = vlaneseq
      %v486 = vshrl.u32 %v485, 7
      %v487 = vsub.s32 3, %v486
      %v488 = vrot.slane %v383, %v487
      %v489 = vlaneseq
      %v490 = vshrl.u32 %v489, 7
      %v491 = vsub.s32 1, %v490
      %v492 = vrot.slane %v484, %v491
      %v493 = vlaneseq
      %v494 = vshrl.u32 %v493, 7
      %v495 = vsub.s32 1, %v494
      %v496 = vrot.slane %v488, %v495
      %vm497 = vcmp.eq.s32.totalorder %v388, %v492
      %vm498 = vcmp.eq.s32.totalorder %v388, %v496
      %vm499 = vcmp.eq.s32.totalorder %v389, %v492
      %vm500 = vcmp.eq.s32.totalorder %v389, %v496
      %v501 = vlaneseq
      %v502 = vshrl.u32 %v501, 7
      %v503 = vsub.s32 1, %v502
      %v504 = vrot.slane %v410, %v503
      %v505 = vlaneseq
      %v506 = vshrl.u32 %v505, 7
      %v507 = vsub.s32 3, %v506
      %v508 = vrot.slane %v410, %v507
      %v511 = vlaneseq
      %v512 = vshrl.u32 %v511, 7
      %v513 = vsub.s32 1, %v512
      %v514 = vrot.slane %v504, %v513
      %v515 = vlaneseq
      %v516 = vshrl.u32 %v515, 7
      %v517 = vsub.s32 1, %v516
      %v518 = vrot.slane %v508, %v517
      %v519 = vsel %vm497, %v514, 0.0
      %v520 = vsel %vm498, %v518, 0.0
      %v521 = vsel %vm499, %v514, 0.0
      %v522 = vsel %vm500, %v518, 0.0
      %v523 = vlaneseq
      %v524 = vshrl.u32 %v523, 7
      %v525 = vsub.s32 1, %v524
      %v526 = vrot.slane %v386, %v525
      %v527 = vlaneseq
      %v528 = vshrl.u32 %v527, 7
      %v529 = vsub.s32 3, %v528
      %v530 = vrot.slane %v386, %v529
      %v531 = vlaneseq
      %v532 = vshrl.u32 %v531, 7
      %v533 = vsub.s32 1, %v532
      %v534 = vrot.slane %v526, %v533
      %v535 = vlaneseq
      %v536 = vshrl.u32 %v535, 7
      %v537 = vsub.s32 1, %v536
      %v538 = vrot.slane %v530, %v537
      %vm539 = vcmp.eq.s32.totalorder %v388, %v534
      %vm540 = vcmp.eq.s32.totalorder %v388, %v538
      %vm541 = vcmp.eq.s32.totalorder %v389, %v534
      %vm542 = vcmp.eq.s32.totalorder %v389, %v538
      %v543 = vlaneseq
      %v544 = vshrl.u32 %v543, 7
      %v545 = vsub.s32 1, %v544
      %v546 = vrot.slane %v382, %v545
      %v547 = vlaneseq
      %v548 = vshrl.u32 %v547, 7
      %v549 = vsub.s32 3, %v548
      %v550 = vrot.slane %v382, %v549
      %v553 = vlaneseq
      %v554 = vshrl.u32 %v553, 7
      %v555 = vsub.s32 1, %v554
      %v556 = vrot.slane %v546, %v555
      %v557 = vlaneseq
      %v558 = vshrl.u32 %v557, 7
      %v559 = vsub.s32 1, %v558
      %v560 = vrot.slane %v550, %v559
      %v561 = vsel %vm539, %v556, 0.0
      %v562 = vsel %vm540, %v560, 0.0
      %v563 = vsel %vm541, %v556, 0.0
      %v564 = vsel %vm542, %v560, 0.0
      %v565 = vadd.f32 %v519, %v561
      %v566 = vadd.f32 %v520, %v562
      %v567 = vadd.f32 %v521, %v563
      %v568 = vadd.f32 %v522, %v564
      %vm569 = vcmask 130048
      %v571 = vsel %vm569, %v326, 0
      %v574 = vsel %vm569, %v327, 0
      %v577 = vsel %vm569, %v328, 0
      %v580 = vsel %vm569, %v329, 0
      %v583 = vsel %vm569, %v330, 0
      %v586 = vsel %vm569, %v331, 0
      %588 = vmatprep.subr.mxu0 %v478
      %589 = vmatpush1.msra.mxu0 %v477
      %590 = vmatprep.subr.mxu0 %v480
      %591 = vmatpush1.msra.mxu0 %v479
      %592 = vmatprep.subr.mxu0 0.0
      %593 = vmatpush1.msra.mxu0 0.0
      %594 = vmatprep.subr.mxu0 0.0
      %595 = vmatpush1.msra.mxu0 0.0
      %596 = vmatprep.subr.mxu0 0.0
      %597 = vmatpush1.msra.mxu0 0.0
      %598 = vmatprep.subr.mxu0 0.0
      %599 = vmatpush1.msra.mxu0 0.0
      %600 = vmatprep.subr.mxu0 0.0
      %601 = vmatpush1.msra.mxu0 0.0
      %602 = vmatprep.subr.mxu0 0.0
      %603 = vmatpush1.msra.mxu0 0.0
      %604 = vmatprep.subr.mxu0 0.0
      %605 = vmatpush1.msra.mxu0 0.0
      %606 = vmatprep.subr.mxu0 0.0
      %607 = vmatpush1.msra.mxu0 0.0
      %608 = vmatprep.subr.mxu0 0.0
      %609 = vmatpush1.msra.mxu0 0.0
      %610 = vmatprep.subr.mxu0 0.0
      %611 = vmatpush1.msra.mxu0 0.0
      %612 = vmatprep.subr.mxu0 0.0
      %613 = vmatpush1.msra.mxu0 0.0
      %614 = vmatprep.subr.mxu0 0.0
      %615 = vmatpush1.msra.mxu0 0.0
      %616 = vmatprep.subr.mxu0 0.0
      %617 = vmatpush1.msra.mxu0 0.0
      %618 = vmatprep.subr.mxu0 0.0
      %619 = vmatpush1.msra.mxu0 0.0
      %620 = vmatprep.subr.mxu0 0.0
      %621 = vmatpush1.msra.mxu0 0.0
      %622 = vmatprep.subr.mxu0 0.0
      %623 = vmatpush1.msra.mxu0 0.0
      %624 = vmatprep.subr.mxu0 0.0
      %625 = vmatpush1.msra.mxu0 0.0
      %626 = vmatprep.subr.mxu0 0.0
      %627 = vmatpush1.msra.mxu0 0.0
      %628 = vmatprep.subr.mxu0 0.0
      %629 = vmatpush1.msra.mxu0 0.0
      %630 = vmatprep.subr.mxu0 0.0
      %631 = vmatpush1.msra.mxu0 0.0
      %632 = vmatprep.subr.mxu0 0.0
      %633 = vmatpush1.msra.mxu0 0.0
      %634 = vmatprep.subr.mxu0 0.0
      %635 = vmatpush1.msra.mxu0 0.0
      %636 = vmatprep.subr.mxu0 0.0
      %637 = vmatpush1.msra.mxu0 0.0
      %638 = vmatprep.subr.mxu0 0.0
      %639 = vmatpush1.msra.mxu0 0.0
      %640 = vmatprep.subr.mxu0 0.0
      %641 = vmatpush1.msra.mxu0 0.0
      %642 = vmatprep.subr.mxu0 0.0
      %643 = vmatpush1.msra.mxu0 0.0
      %644 = vmatprep.subr.mxu0 0.0
      %645 = vmatpush1.msra.mxu0 0.0
      %646 = vmatprep.subr.mxu0 0.0
      %647 = vmatpush1.msra.mxu0 0.0
      %648 = vmatprep.subr.mxu0 0.0
      %649 = vmatpush1.msra.mxu0 0.0
      %650 = vmatprep.subr.mxu0 0.0
      %651 = vmatpush1.msra.mxu0 0.0
      %652 = vmatprep.mubr.f32.mxu0 0.0
      %653 = vmatmul.mubr.f32.gmra.mrb[0].mxu0 %v571
      %v654 = vpop.f32.mrb[0].mxu0
      %v655 = vadd.f32 0.0, %v654
      %v656 = vpop.f32.mrb[0].mxu0
      %v657 = vadd.f32 0.0, %v656
      %658 = vmatprep.mubr.f32.mxu0 0.0
      %659 = vmatmul.mubr.f32.gmra.mrb[0].mxu0 %v574
      %v660 = vpop.f32.mrb[0].mxu0
      %v661 = vadd.f32 0.0, %v660
      %v662 = vpop.f32.mrb[0].mxu0
      %v663 = vadd.f32 0.0, %v662
      %664 = vmatprep.mubr.f32.mxu0 0.0
      %665 = vmatmul.mubr.f32.gmra.mrb[0].mxu0 %v577
      %v666 = vpop.f32.mrb[0].mxu0
      %v667 = vadd.f32 0.0, %v666
      %v668 = vpop.f32.mrb[0].mxu0
      %v669 = vadd.f32 0.0, %v668
      %670 = vmatprep.mubr.f32.mxu0 0.0
      %671 = vmatmul.mubr.f32.gmra.mrb[0].mxu0 %v580
      %v672 = vpop.f32.mrb[0].mxu0
      %v673 = vadd.f32 0.0, %v672
      %v674 = vpop.f32.mrb[0].mxu0
      %v675 = vadd.f32 0.0, %v674
      %676 = vmatprep.mubr.f32.mxu0 0.0
      %677 = vmatmul.mubr.f32.gmra.mrb[0].mxu0 %v583
      %v678 = vpop.f32.mrb[0].mxu0
      %v679 = vadd.f32 0.0, %v678
      %v680 = vpop.f32.mrb[0].mxu0
      %v681 = vadd.f32 0.0, %v680
      %682 = vmatprep.mubr.f32.mxu0 0.0
      %683 = vmatmul.mubr.f32.gmra.mrb[0].mxu0 %v586
      %v684 = vpop.f32.mrb[0].mxu0
      %v685 = vadd.f32 0.0, %v684
      %v686 = vpop.f32.mrb[0].mxu0
      %v687 = vadd.f32 0.0, %v686
      %688 = vdwg.mxu0
      %v689 = vmul.f32 %v655, %v565
      %v690 = vmul.f32 %v657, %v566
      %v691 = vmul.f32 %v661, %v567
      %v692 = vmul.f32 %v663, %v568
      %v693 = vmul.f32 %v667, %v565
      %v694 = vmul.f32 %v669, %v566
      %v695 = vmul.f32 %v673, %v567
      %v696 = vmul.f32 %v675, %v568
      %v697 = vmul.f32 %v679, %v565
      %v698 = vmul.f32 %v681, %v566
      %v699 = vmul.f32 %v685, %v567
      %v700 = vmul.f32 %v687, %v568
      %v701 = vld [vmem:[%s2] sm:$0xff]
      %v702 = vld [vmem:[%s3] sm:$0xff]
      %704 = vset.pattern.permute.xlu0 0
      %705 = vperm.xlu0 %704, %v702
      %v706 = vpop.permute.xlu0 %705
      %vm708 = vcmask 392192
      %v710 = vsel %vm708, %v701, 0
      %712 = vmatprep.subr.mxu0 %v690
      %713 = vmatpush1.msra.mxu0 %v689
      %714 = vmatprep.subr.mxu0 %v692
      %715 = vmatpush1.msra.mxu0 %v691
      %716 = vmatprep.subr.mxu0 %v694
      %717 = vmatpush1.msra.mxu0 %v693
      %718 = vmatprep.subr.mxu0 %v696
      %719 = vmatpush1.msra.mxu0 %v695
      %720 = vmatprep.subr.mxu0 %v698
      %721 = vmatpush1.msra.mxu0 %v697
      %722 = vmatprep.subr.mxu0 %v700
      %723 = vmatpush1.msra.mxu0 %v699
      %724 = vmatprep.subr.mxu0 0.0
      %725 = vmatpush1.msra.mxu0 0.0
      %726 = vmatprep.subr.mxu0 0.0
      %727 = vmatpush1.msra.mxu0 0.0
      %728 = vmatprep.subr.mxu0 0.0
      %729 = vmatpush1.msra.mxu0 0.0
      %730 = vmatprep.subr.mxu0 0.0
      %731 = vmatpush1.msra.mxu0 0.0
      %732 = vmatprep.subr.mxu0 0.0
      %733 = vmatpush1.msra.mxu0 0.0
      %734 = vmatprep.subr.mxu0 0.0
      %735 = vmatpush1.msra.mxu0 0.0
      %736 = vmatprep.subr.mxu0 0.0
      %737 = vmatpush1.msra.mxu0 0.0
      %738 = vmatprep.subr.mxu0 0.0
      %739 = vmatpush1.msra.mxu0 0.0
      %740 = vmatprep.subr.mxu0 0.0
      %741 = vmatpush1.msra.mxu0 0.0
      %742 = vmatprep.subr.mxu0 0.0
      %743 = vmatpush1.msra.mxu0 0.0
      %744 = vmatprep.subr.mxu0 0.0
      %745 = vmatpush1.msra.mxu0 0.0
      %746 = vmatprep.subr.mxu0 0.0
      %747 = vmatpush1.msra.mxu0 0.0
      %748 = vmatprep.subr.mxu0 0.0
      %749 = vmatpush1.msra.mxu0 0.0
      %750 = vmatprep.subr.mxu0 0.0
      %751 = vmatpush1.msra.mxu0 0.0
      %752 = vmatprep.subr.mxu0 0.0
      %753 = vmatpush1.msra.mxu0 0.0
      %754 = vmatprep.subr.mxu0 0.0
      %755 = vmatpush1.msra.mxu0 0.0
      %756 = vmatprep.subr.mxu0 0.0
      %757 = vmatpush1.msra.mxu0 0.0
      %758 = vmatprep.subr.mxu0 0.0
      %759 = vmatpush1.msra.mxu0 0.0
      %760 = vmatprep.subr.mxu0 0.0
      %761 = vmatpush1.msra.mxu0 0.0
      %762 = vmatprep.subr.mxu0 0.0
      %763 = vmatpush1.msra.mxu0 0.0
      %764 = vmatprep.subr.mxu0 0.0
      %765 = vmatpush1.msra.mxu0 0.0
      %766 = vmatprep.subr.mxu0 0.0
      %767 = vmatpush1.msra.mxu0 0.0
      %768 = vmatprep.subr.mxu0 0.0
      %769 = vmatpush1.msra.mxu0 0.0
      %770 = vmatprep.subr.mxu0 0.0
      %771 = vmatpush1.msra.mxu0 0.0
      %772 = vmatprep.subr.mxu0 0.0
      %773 = vmatpush1.msra.mxu0 0.0
      %774 = vmatprep.subr.mxu0 0.0
      %775 = vmatpush1.msra.mxu0 0.0
      %776 = vmatprep.mubr.f32.mxu0 0.0
      %777 = vmatmul.mubr.f32.gmra.mrb[0].mxu0 %v710
      %v778 = vpop.f32.mrb[0].mxu0
      %v779 = vadd.f32 %v706, %v778
      %v780 = vpop.f32.mrb[0].mxu0
      %v781 = vadd.f32 %v706, %v780
      %782 = vdwg.mxu0
      %v783 = vmax.f32 %v779, 0.0
      %v784 = vmax.f32 %v781, 0.0
      %v785 = vld [vmem:[%s4] sm:$0xf]
      %v786 = vld [vmem:[%s5] sm:$0xf]
      %788 = vset.pattern.permute.xlu0 0
      %789 = vperm.xlu0 %788, %v786
      %v790 = vpop.permute.xlu0 %789
      %vm792 = vcmask 31744
      %v794 = vsel %vm792, %v785, 0
      %vm796 = vcmask 1043456
      %v798 = vsel %vm796, %v783, 0
      %v801 = vsel %vm796, %v784, 0
      %803 = vmatprep.subr.mxu0 %v801
      %804 = vmatpush1.msra.mxu0 %v798
      %805 = vmatprep.subr.mxu0 0.0
      %806 = vmatpush1.msra.mxu0 0.0
      %807 = vmatprep.subr.mxu0 0.0
      %808 = vmatpush1.msra.mxu0 0.0
      %809 = vmatprep.subr.mxu0 0.0
      %810 = vmatpush1.msra.mxu0 0.0
      %811 = vmatprep.subr.mxu0 0.0
      %812 = vmatpush1.msra.mxu0 0.0
      %813 = vmatprep.subr.mxu0 0.0
      %814 = vmatpush1.msra.mxu0 0.0
      %815 = vmatprep.subr.mxu0 0.0
      %816 = vmatpush1.msra.mxu0 0.0
      %817 = vmatprep.subr.mxu0 0.0
      %818 = vmatpush1.msra.mxu0 0.0
      %819 = vmatprep.subr.mxu0 0.0
      %820 = vmatpush1.msra.mxu0 0.0
      %821 = vmatprep.subr.mxu0 0.0
      %822 = vmatpush1.msra.mxu0 0.0
      %823 = vmatprep.subr.mxu0 0.0
      %824 = vmatpush1.msra.mxu0 0.0
      %825 = vmatprep.subr.mxu0 0.0
      %826 = vmatpush1.msra.mxu0 0.0
      %827 = vmatprep.subr.mxu0 0.0
      %828 = vmatpush1.msra.mxu0 0.0
      %829 = vmatprep.subr.mxu0 0.0
      %830 = vmatpush1.msra.mxu0 0.0
      %831 = vmatprep.subr.mxu0 0.0
      %832 = vmatpush1.msra.mxu0 0.0
      %833 = vmatprep.subr.mxu0 0.0
      %834 = vmatpush1.msra.mxu0 0.0
      %835 = vmatprep.subr.mxu0 0.0
      %836 = vmatpush1.msra.mxu0 0.0
      %837 = vmatprep.subr.mxu0 0.0
      %838 = vmatpush1.msra.mxu0 0.0
      %839 = vmatprep.subr.mxu0 0.0
      %840 = vmatpush1.msra.mxu0 0.0
      %841 = vmatprep.subr.mxu0 0.0
      %842 = vmatpush1.msra.mxu0 0.0
      %843 = vmatprep.subr.mxu0 0.0
      %844 = vmatpush1.msra.mxu0 0.0
      %845 = vmatprep.subr.mxu0 0.0
      %846 = vmatpush1.msra.mxu0 0.0
      %847 = vmatprep.subr.mxu0 0.0
      %848 = vmatpush1.msra.mxu0 0.0
      %849 = vmatprep.subr.mxu0 0.0
      %850 = vmatpush1.msra.mxu0 0.0
      %851 = vmatprep.subr.mxu0 0.0
      %852 = vmatpush1.msra.mxu0 0.0
      %853 = vmatprep.subr.mxu0 0.0
      %854 = vmatpush1.msra.mxu0 0.0
      %855 = vmatprep.subr.mxu0 0.0
      %856 = vmatpush1.msra.mxu0 0.0
      %857 = vmatprep.subr.mxu0 0.0
      %858 = vmatpush1.msra.mxu0 0.0
      %859 = vmatprep.subr.mxu0 0.0
      %860 = vmatpush1.msra.mxu0 0.0
      %861 = vmatprep.subr.mxu0 0.0
      %862 = vmatpush1.msra.mxu0 0.0
      %863 = vmatprep.subr.mxu0 0.0
      %864 = vmatpush1.msra.mxu0 0.0
      %865 = vmatprep.subr.mxu0 0.0
      %866 = vmatpush1.msra.mxu0 0.0
      %867 = vmatprep.mubr.f32.mxu0 0.0
      %868 = vmatmul.mubr.f32.gmra.mrb[0].mxu0 %v794
      %v869 = vpop.f32.mrb[0].mxu0
      %v870 = vadd.f32 %v790, %v869
      %v871 = vpop.f32.mrb[0].mxu0
      %v872 = vadd.f32 %v790, %v871
      %873 = vdwg.mxu0
      %v876 = vrot.slane %v779, 4
      %v877 = vrot.slane %v781, 4
      %v880 = vadd.f32 %v870, %v876
      %v881 = vadd.f32 %v872, %v877
      %v882 = vmax.f32 %v880, 0.0
      %v883 = vmax.f32 %v881, 0.0
      %v884 = vld [vmem:[%s6] sm:$0x7]
      %v885 = vld [vmem:[%s7] sm:$0x7]
      %887 = vset.pattern.permute.xlu0 0
      %888 = vperm.xlu0 %887, %v885
      %v889 = vpop.permute.xlu0 %888
      %v892 = vsel %vm792, %v884, 0
      %v895 = vsel %vm796, %v882, 0
      %v898 = vsel %vm796, %v883, 0
      %900 = vmatprep.subr.mxu0 %v898
      %901 = vmatpush1.msra.mxu0 %v895
      %902 = vmatprep.subr.mxu0 0.0
      %903 = vmatpush1.msra.mxu0 0.0
      %904 = vmatprep.subr.mxu0 0.0
      %905 = vmatpush1.msra.mxu0 0.0
      %906 = vmatprep.subr.mxu0 0.0
      %907 = vmatpush1.msra.mxu0 0.0
      %908 = vmatprep.subr.mxu0 0.0
      %909 = vmatpush1.msra.mxu0 0.0
      %910 = vmatprep.subr.mxu0 0.0
      %911 = vmatpush1.msra.mxu0 0.0
      %912 = vmatprep.subr.mxu0 0.0
      %913 = vmatpush1.msra.mxu0 0.0
      %914 = vmatprep.subr.mxu0 0.0
      %915 = vmatpush1.msra.mxu0 0.0
      %916 = vmatprep.subr.mxu0 0.0
      %917 = vmatpush1.msra.mxu0 0.0
      %918 = vmatprep.subr.mxu0 0.0
      %919 = vmatpush1.msra.mxu0 0.0
      %920 = vmatprep.subr.mxu0 0.0
      %921 = vmatpush1.msra.mxu0 0.0
      %922 = vmatprep.subr.mxu0 0.0
      %923 = vmatpush1.msra.mxu0 0.0
      %924 = vmatprep.subr.mxu0 0.0
      %925 = vmatpush1.msra.mxu0 0.0
      %926 = vmatprep.subr.mxu0 0.0
      %927 = vmatpush1.msra.mxu0 0.0
      %928 = vmatprep.subr.mxu0 0.0
      %929 = vmatpush1.msra.mxu0 0.0
      %930 = vmatprep.subr.mxu0 0.0
      %931 = vmatpush1.msra.mxu0 0.0
      %932 = vmatprep.subr.mxu0 0.0
      %933 = vmatpush1.msra.mxu0 0.0
      %934 = vmatprep.subr.mxu0 0.0
      %935 = vmatpush1.msra.mxu0 0.0
      %936 = vmatprep.subr.mxu0 0.0
      %937 = vmatpush1.msra.mxu0 0.0
      %938 = vmatprep.subr.mxu0 0.0
      %939 = vmatpush1.msra.mxu0 0.0
      %940 = vmatprep.subr.mxu0 0.0
      %941 = vmatpush1.msra.mxu0 0.0
      %942 = vmatprep.subr.mxu0 0.0
      %943 = vmatpush1.msra.mxu0 0.0
      %944 = vmatprep.subr.mxu0 0.0
      %945 = vmatpush1.msra.mxu0 0.0
      %946 = vmatprep.subr.mxu0 0.0
      %947 = vmatpush1.msra.mxu0 0.0
      %948 = vmatprep.subr.mxu0 0.0
      %949 = vmatpush1.msra.mxu0 0.0
      %950 = vmatprep.subr.mxu0 0.0
      %951 = vmatpush1.msra.mxu0 0.0
      %952 = vmatprep.subr.mxu0 0.0
      %953 = vmatpush1.msra.mxu0 0.0
      %954 = vmatprep.subr.mxu0 0.0
      %955 = vmatpush1.msra.mxu0 0.0
      %956 = vmatprep.subr.mxu0 0.0
      %957 = vmatpush1.msra.mxu0 0.0
      %958 = vmatprep.subr.mxu0 0.0
      %959 = vmatpush1.msra.mxu0 0.0
      %960 = vmatprep.subr.mxu0 0.0
      %961 = vmatpush1.msra.mxu0 0.0
      %962 = vmatprep.subr.mxu0 0.0
      %963 = vmatpush1.msra.mxu0 0.0
      %964 = vmatprep.mubr.f32.mxu0 0.0
      %965 = vmatmul.mubr.f32.gmra.mrb[0].mxu0 %v892
      %v966 = vpop.f32.mrb[0].mxu0
      %v967 = vadd.f32 %v889, %v966
      %v968 = vpop.f32.mrb[0].mxu0
      %v969 = vadd.f32 %v889, %v968
      %970 = vdwg.mxu0
      %v973 = vcombine.low %v967, %v969
      %975 = vst [vmem:[%s325] sm:$0x77] %v973
      %p976 = scmp.lt.s32.totalorder %s19, 1
      %s977 = scalar_select %p976, %s19, 1
      %s978 = smul.addr %s977, 2
      %s979 = smul.addr %s978, 4
      %s980 = scalar_lea.vmem %s8, %s979
      // Predicated region
      $region53: #{generator_forward.1} parent=51 // pred_check
        %p981 = pneg %p215
      $region54: #{generator_forward.1} parent=51 // pred_check_branch
        %983 = sbr.rel (%p981) target = $region56
      $region55: #{generator_forward.1} parent=51 // pred_region
        _
      $region56: #{generator_forward.1} parent=51 // pred_fallthru
        _
    $region52: #{generator_forward.1} parent=5 // pred_fallthru
      _
    %p984 = scmp.le.s32.totalorder 2, %s14
    // Predicated region
    $region57: #{generator_forward.1} parent=5 // pred_check
      %p985 = pneg %p984
    $region58: #{generator_forward.1} parent=5 // pred_check_branch
      %987 = sbr.rel (%p985) target = $region60
    $region59: #{generator_forward.1} parent=5 // pred_region
      %s988 = ssub.s32 %s14, 2
      // Predicated region
      $region61: #{generator_forward.1} parent=59 // pred_check
        %p989 = pneg %p221
      $region62: #{generator_forward.1} parent=59 // pred_check_branch
        %991 = sbr.rel (%p989) target = $region64
      $region63: #{generator_forward.1} parent=59 // pred_region
        %p992 = scmp.lt.s32.totalorder %s20, 1
        %s993 = scalar_select %p992, %s20, 1
        %s994 = smul.addr %s993, 2
        %s995 = smul.addr %s994, 4
        %s996 = scalar_lea.vmem %s8, %s995
      $region64: #{generator_forward.1} parent=59 // pred_fallthru
        _
    $region60: #{generator_forward.1} parent=5 // pred_fallthru
      _
  $region6: #{generator_forward.1} parent=0 // loop_footer
    %s18 = sadd.s32 1, %s14
  $region7: #{generator_forward.1} parent=0 // loop_footer_branch
    %13 = sbr.rel target = $region3
  $region8: #{generator_forward.1} parent=0 // loop_exit
    _

</llo_original>
